<compile_context>
chip_gen: v5e
topology: v5e:2x2
jax: 0.10.0
libtpu: 0.0.40
codegen_flags: <defaults>
</compile_context>

<pallas_src>
import functools

import jax
import jax.numpy as jnp
from jax.experimental import pallas as pl
from jax.experimental.pallas import tpu as pltpu


def _layer_norm(x, gamma, beta, eps=1e-5):
    # Two independent reductions (overlap in the XLU) instead of mean-then-var.
    mu = jnp.mean(x, axis=-1, keepdims=True)
    ms = jnp.mean(x * x, axis=-1, keepdims=True)
    var = ms - mu * mu
    return (x - mu) * jax.lax.rsqrt(var + eps) * gamma + beta


def app_usage_kernel(*args, e_layers, d_model, d_ff, compute_loss, compute_dtype):
    if compute_loss:
        (xin_ref, tgt_ref, w_in_ref, w_layers_ref, p_layers_ref,
         g_ref, w_proj_ref, out_ref) = args
    else:
        (xin_ref, w_in_ref, w_layers_ref, p_layers_ref,
         g_ref, w_proj_ref, out_ref) = args
        tgt_ref = None

    f32 = jnp.float32
    D, F = d_model, d_ff

    def mm(a, w):
        # bf16 operands on the MXU, f32 accumulation.
        return jnp.dot(a.astype(compute_dtype), w, preferred_element_type=f32)

    row = xin_ref[...]                      # (tile_b, D+Tf+24)  f32
    g = g_ref[...]                          # (8, P)             f32
    bt, gF, bF = g[0:1, :D], g[1:2, :D], g[2:3, :D]
    bp = g[3:4, :]                          # pad cols carry -1e30

    # encode_input: app_emb[:, -1, :] + time_emb(x_time)  — folded to 1 matmul
    x = mm(row, w_in_ref[...]) + bt         # (tile_b, D)  f32

    for l in range(e_layers):
        w_l = w_layers_ref[l]               # (2D+F, W) bf16, packed slab
        p_l = p_layers_ref[l]               # (8, W)    f32,  packed slab
        wvo = w_l[0:D, 0:D]
        wf1 = w_l[D:2 * D, 0:F]
        wf2 = w_l[2 * D:2 * D + F, 0:D]
        b_vo, bf1, bf2 = p_l[0:1, :D], p_l[1:2, :F], p_l[2:3, :D]
        g1, be1 = p_l[3:4, :D], p_l[4:5, :D]
        g2, be2 = p_l[5:6, :D], p_l[6:7, :D]

        # seq-len-1 attention: softmax == 1 → one folded matmul (exact).
        new_x = mm(x, wvo) + b_vo
        x = _layer_norm(x + new_x, g1, be1)
        # Position-wise FFN (Conv1d k=1 == Linear), relu, dropout==id (eval).
        y = jnp.maximum(mm(x, wf1) + bf1, 0.0)
        y = mm(y, wf2) + bf2
        x = _layer_norm(x + y, g2, be2)

    # final encoder LayerNorm; enc_out[:, -1, :] == x since L == 1
    x = _layer_norm(x, gF, bF)

    # projection on cat(x_last, time_vecs[:, -1, :]) — split matmul; the
    # time_vecs half reuses the already-resident row (zero rows elsewhere).
    wp = w_proj_ref[...]                    # (D + Din, P) bf16
    score = mm(x, wp[0:D, :]) + mm(row, wp[D:, :]) + bp

    if compute_loss:
        m = jnp.max(score, axis=-1, keepdims=True)
        lse = m + jnp.log(jnp.sum(jnp.exp(score - m), axis=-1, keepdims=True))
        cols = jax.lax.broadcasted_iota(jnp.int32, score.shape, 1)
        onehot = (cols == tgt_ref[...]).astype(f32)
        picked = jnp.sum(score * onehot, axis=-1, keepdims=True)
        out_ref[...] = lse - picked         # per-row CE; mean taken on host
    else:
        out_ref[...] = score


def make_params(key, cfg):
    D = cfg['d_model']; E = cfg['e_layers']; Dff = cfg['d_ff']
    Tf = cfg['time_feat_dim']; Napp = cfg['num_app']; V = cfg['app_vocab_size']
    ks = jax.random.split(key, 12)
    n = lambda k, shape: 0.02 * jax.random.normal(k, shape, jnp.float32)
    # Wq/Wk omitted: with sequence length 1 the attention softmax is
    # identically 1, so they provably never affect the forward output.
    return dict(
        emb=n(ks[0], (V, D)),
        wt=n(ks[1], (Tf, D)), bt=n(ks[2], (1, D)),
        wv=n(ks[3], (E, D, D)), bv=n(ks[4], (E, 1, D)),
        wo=n(ks[5], (E, D, D)), bo=n(ks[6], (E, 1, D)),
        wf1=n(ks[7], (E, D, Dff)), bf1=n(ks[8], (E, 1, Dff)),
        wf2=n(ks[9], (E, Dff, D)), bf2=n(ks[10], (E, 1, D)),
        g1=jnp.ones((E, 1, D), jnp.float32), be1=jnp.zeros((E, 1, D), jnp.float32),
        g2=jnp.ones((E, 1, D), jnp.float32), be2=jnp.zeros((E, 1, D), jnp.float32),
        gF=jnp.ones((1, D), jnp.float32), bF=jnp.zeros((1, D), jnp.float32),
        wp1=n(ks[11], (D, Napp)),
        wp2=n(jax.random.fold_in(key, 100), (24, Napp)),
        bp=n(jax.random.fold_in(key, 101), (1, Napp)),
    )


def prepare_model(params, cfg, use_bf16=True):
    """One-time host-side weight prep (folds, packing, padding, bf16 casts).

    Call once; the returned dict is reused by every app_usage_forward call so
    no per-call XLA weight-prep ops are launched.
    """
    D = cfg['d_model']; E = cfg['e_layers']; Dff = cfg['d_ff']
    Tf = cfg['time_feat_dim']; Napp = cfg['num_app']
    Din = D + Tf + 24                                   # packed row width
    P = max(128, ((Napp + 127) // 128) * 128)           # lane-dense projection
    W = max(D, Dff)
    cd = jnp.bfloat16 if use_bf16 else jnp.float32

    # encode_input fold: row @ [[I_D];[wt];[0]] == app_last + x_time @ wt
    w_in = jnp.zeros((Din, D), jnp.float32)
    w_in = w_in.at[:D, :].set(jnp.eye(D, dtype=jnp.float32))
    w_in = w_in.at[D:D + Tf, :].set(params['wt'])

    # seq-len-1 attention fold: Wv@Wo and bv@Wo + bo
    w_vo = jnp.einsum('eij,ejk->eik', params['wv'], params['wo'])
    b_vo = jnp.einsum('eij,ejk->eik', params['bv'], params['wo']) + params['bo']

    # per-layer matmul weights packed along sublanes (one bf16 slab):
    #   rows [0:D]        = Wv@Wo      (cols :D)
    #   rows [D:2D]       = Wff1       (cols :Dff)
    #   rows [2D:2D+Dff]  = Wff2       (cols :D)
    w_layers = jnp.zeros((E, 2 * D + Dff, W), jnp.float32)
    w_layers = w_layers.at[:, 0:D, 0:D].set(w_vo)
    w_layers = w_layers.at[:, D:2 * D, 0:Dff].set(params['wf1'])
    w_layers = w_layers.at[:, 2 * D:2 * D + Dff, 0:D].set(params['wf2'])

    # per-layer f32 vectors packed into one (E, 8, W) slab
    p_layers = jnp.zeros((E, 8, W), jnp.float32)
    p_layers = p_layers.at[:, 0, :D].set(b_vo[:, 0, :])
    p_layers = p_layers.at[:, 1, :Dff].set(params['bf1'][:, 0, :])
    p_layers = p_layers.at[:, 2, :D].set(params['bf2'][:, 0, :])
    p_layers = p_layers.at[:, 3, :D].set(params['g1'][:, 0, :])
    p_layers = p_layers.at[:, 4, :D].set(params['be1'][:, 0, :])
    p_layers = p_layers.at[:, 5, :D].set(params['g2'][:, 0, :])
    p_layers = p_layers.at[:, 6, :D].set(params['be2'][:, 0, :])

    # global f32 vectors packed into one (8, P) slab:
    #   row 0: bt, row 1: gamma_final, row 2: beta_final, row 3: bp (pad -1e30)
    g_params = jnp.zeros((8, P), jnp.float32)
    g_params = g_params.at[0, :D].set(params['bt'][0])
    g_params = g_params.at[1, :D].set(params['gF'][0])
    g_params = g_params.at[2, :D].set(params['bF'][0])
    g_params = g_params.at[3, :].set(jnp.full((P,), -1e30, jnp.float32))
    g_params = g_params.at[3, :Napp].set(params['bp'][0])

    # projection: rows [0:D] act on x_last; rows [D:D+Din] act on the packed
    # row (only the time_vecs columns are non-zero).
    w_proj = jnp.zeros((D + Din, P), jnp.float32)
    w_proj = w_proj.at[0:D, :Napp].set(params['wp1'])
    w_proj = w_proj.at[D + D + Tf:D + D + Tf + 24, :Napp].set(params['wp2'])

    prepped = dict(
        emb=params['emb'],
        w_in=jax.device_put(w_in.astype(cd)),
        w_layers=jax.device_put(w_layers.astype(cd)),
        p_layers=jax.device_put(p_layers),
        g_params=jax.device_put(g_params),
        w_proj=jax.device_put(w_proj.astype(cd)),
        meta=dict(D=D, E=E, Dff=Dff, Tf=Tf, Napp=Napp, Din=Din, P=P, cd=cd),
    )
    return prepped


def app_usage_forward(prepped, x_app, x_time, time_vecs, targets, mode,
                      tile_b_max=1024):
    meta = prepped['meta']
    D, E, Dff = meta['D'], meta['E'], meta['Dff']
    Napp, Din, P, cd = meta['Napp'], meta['Din'], meta['P'], meta['cd']
    B = x_app.shape[0]
    compute_loss = (mode != 'predict')

    # --- per-call input glue (data-dependent, stays in XLA) ---
    # TODO(synk): embedding gather stays in XLA (jnp.take); no in-kernel DMA
    # gather is worth it at this size.
    app_last = jnp.take(prepped['emb'], x_app[:, -1].astype(jnp.int32), axis=0)
    row = jnp.concatenate([app_last, x_time, time_vecs[:, -1, :]], axis=1)

    # --- tile selection: big tiles (overhead-bound kernel), sublane-legal ---
    assert tile_b_max % 8 == 0
    b8 = ((B + 7) // 8) * 8
    tile_b = b8 if b8 <= tile_b_max else tile_b_max
    B_pad = ((B + tile_b - 1) // tile_b) * tile_b
    if B_pad != B:
        row = jnp.pad(row, ((0, B_pad - B), (0, 0)))
    num_tiles = B_pad // tile_b

    inputs = [row]
    in_specs = [pl.BlockSpec((tile_b, Din), lambda i: (i, 0))]
    if compute_loss:
        tgt = targets.reshape(B, 1).astype(jnp.int32)
        if B_pad != B:
            tgt = jnp.pad(tgt, ((0, B_pad - B), (0, 0)))
        inputs.append(tgt)
        in_specs.append(pl.BlockSpec((tile_b, 1), lambda i: (i, 0)))

    inputs += [prepped['w_in'], prepped['w_layers'], prepped['p_layers'],
               prepped['g_params'], prepped['w_proj']]
    in_specs += [
        pl.BlockSpec((Din, D), lambda i: (0, 0)),
        pl.BlockSpec(prepped['w_layers'].shape, lambda i: (0, 0, 0)),
        pl.BlockSpec(prepped['p_layers'].shape, lambda i: (0, 0, 0)),
        pl.BlockSpec((8, P), lambda i: (0, 0)),
        pl.BlockSpec((D + Din, P), lambda i: (0, 0)),
    ]

    if compute_loss:
        out_specs = pl.BlockSpec((tile_b, 1), lambda i: (i, 0))
        out_shape = jax.ShapeDtypeStruct((B_pad, 1), jnp.float32)
    else:
        out_specs = pl.BlockSpec((tile_b, P), lambda i: (i, 0))
        out_shape = jax.ShapeDtypeStruct((B_pad, P), jnp.float32)

    kernel = functools.partial(app_usage_kernel, e_layers=E, d_model=D,
                               d_ff=Dff, compute_loss=compute_loss,
                               compute_dtype=cd)

    out = pl.pallas_call(
        kernel,
        grid=(num_tiles,),
        in_specs=in_specs,
        out_specs=out_specs,
        out_shape=out_shape,
        # Per-row loss output -> no resident accumulator -> grid is fully
        # parallel in both modes (v7x megacore friendly).
        compiler_params=pltpu.CompilerParams(dimension_semantics=("parallel",)),
    )(*inputs)

    if compute_loss:
        return jnp.sum(out[:B, 0]) / B
    return out[:B, :Napp]


def reference_forward(params, x_app, x_time, time_vecs, targets, cfg):
    """Pure-JAX f32 reference mirroring the PyTorch forward (eval mode)."""
    E = cfg['e_layers']
    app_last = jnp.take(params['emb'], x_app[:, -1].astype(jnp.int32), axis=0)
    x = app_last + x_time @ params['wt'] + params['bt']

    def ln(x, g, b, eps=1e-5):
        mu = jnp.mean(x, axis=-1, keepdims=True)
        var = jnp.mean((x - mu) ** 2, axis=-1, keepdims=True)
        return (x - mu) * jax.lax.rsqrt(var + eps) * g + b

    for l in range(E):
        v = x @ params['wv'][l] + params['bv'][l]
        new_x = v @ params['wo'][l] + params['bo'][l]   # softmax over len-1 == 1
        x = ln(x + new_x, params['g1'][l], params['be1'][l])
        y = jnp.maximum(x @ params['wf1'][l] + params['bf1'][l], 0.0)
        y = y @ params['wf2'][l] + params['bf2'][l]
        x = ln(x + y, params['g2'][l], params['be2'][l])
    x = ln(x, params['gF'], params['bF'])
    out = jnp.concatenate([x, time_vecs[:, -1, :]], axis=1)
    wp = jnp.concatenate([params['wp1'], params['wp2']], axis=0)
    score = out @ wp + params['bp']
    lse = jax.nn.logsumexp(score, axis=-1)
    picked = jnp.take_along_axis(score, targets.reshape(-1, 1), axis=1)[:, 0]
    return score, jnp.mean(lse - picked)


if __name__ == "__main__":
    cfg = dict(seq_len=8, d_model=32, n_heads=4, d_ff=64, e_layers=2,
               app_vocab_size=50, num_app=50, time_feat_dim=8,
               dropout=0.1, activation='relu', factor=5)
    B = 16
    key = jax.random.PRNGKey(0)
    kp, k1, k2, k3, k4 = jax.random.split(key, 5)

    params = make_params(kp, cfg)
    prepped = prepare_model(params, cfg, use_bf16=True)   # one-time weight prep

    x_app = jax.random.randint(k1, (B, cfg['seq_len']), 0, cfg['app_vocab_size'])
    x_time = jax.random.normal(k2, (B, cfg['time_feat_dim']), jnp.float32)
    time_vecs = jax.random.normal(k3, (B, cfg['seq_len'], 24), jnp.float32)
    targets = jax.random.randint(k4, (B,), 0, cfg['num_app'])

    score = app_usage_forward(prepped, x_app, x_time, time_vecs, targets,
                              'predict')
    loss = app_usage_forward(prepped, x_app, x_time, time_vecs, targets,
                             'train')
    jax.block_until_ready((score, loss))

    ref_score, ref_loss = reference_forward(params, x_app, x_time, time_vecs,
                                            targets, cfg)
    # bf16 matmul operands (f32 accumulation) -> slightly looser tolerance.
    assert score.shape == (B, cfg['num_app'])
    assert jnp.allclose(score, ref_score, atol=2e-2, rtol=2e-2)
    assert jnp.allclose(loss, ref_loss, atol=2e-2, rtol=2e-2)
    print("KERNEL_OK")
</pallas_src>

<mosaic_0001>
module attributes {stable_mosaic.version = 11 : i64} {
  func.func @app_usage_kernel(%arg0: i32, %arg1: memref<16x64xf32, #tpu.memory_space<vmem>>, %arg2: memref<64x32xbf16, #tpu.memory_space<vmem>>, %arg3: memref<2x128x64xbf16, #tpu.memory_space<vmem>>, %arg4: memref<2x8x64xf32, #tpu.memory_space<vmem>>, %arg5: memref<8x128xf32, #tpu.memory_space<vmem>>, %arg6: memref<96x128xbf16, #tpu.memory_space<vmem>>, %arg7: memref<16x128xf32, #tpu.memory_space<vmem>>) attributes {dimension_semantics = [#tpu.dimension_semantics<parallel>], iteration_bounds = array<i64: 1>, scalar_prefetch = 0 : i64, scratch_operands = 0 : i64, tpu.core_type = #tpu.core_type<tc>, window_params = [{transform_indices = @transform_0, window_bounds = array<i64: 16, 64>}, {pipeline_mode = #tpu.pipeline_mode<synchronous>, transform_indices = @transform_1, window_bounds = array<i64: 64, 32>}, {pipeline_mode = #tpu.pipeline_mode<synchronous>, transform_indices = @transform_2, window_bounds = array<i64: 2, 128, 64>}, {pipeline_mode = #tpu.pipeline_mode<synchronous>, transform_indices = @transform_3, window_bounds = array<i64: 2, 8, 64>}, {pipeline_mode = #tpu.pipeline_mode<synchronous>, transform_indices = @transform_4, window_bounds = array<i64: 8, 128>}, {pipeline_mode = #tpu.pipeline_mode<synchronous>, transform_indices = @transform_5, window_bounds = array<i64: 96, 128>}, {transform_indices = @transform_6, window_bounds = array<i64: 16, 128>}]} {
    %c0 = arith.constant 0 : index
    %c0_0 = arith.constant 0 : index
    %0 = vector.load %arg1[%c0, %c0_0] : memref<16x64xf32, #tpu.memory_space<vmem>>, vector<16x64xf32>
    %c0_1 = arith.constant 0 : index
    %c0_2 = arith.constant 0 : index
    %1 = vector.load %arg5[%c0_1, %c0_2] : memref<8x128xf32, #tpu.memory_space<vmem>>, vector<8x128xf32>
    %2 = vector.extract_strided_slice %1 {offsets = [0, 0], sizes = [1, 32], strides = [1, 1]} : vector<8x128xf32> to vector<1x32xf32>
    %3 = vector.extract_strided_slice %1 {offsets = [1, 0], sizes = [1, 32], strides = [1, 1]} : vector<8x128xf32> to vector<1x32xf32>
    %4 = vector.extract_strided_slice %1 {offsets = [2, 0], sizes = [1, 32], strides = [1, 1]} : vector<8x128xf32> to vector<1x32xf32>
    %5 = vector.extract_strided_slice %1 {offsets = [3, 0], sizes = [1, 128], strides = [1, 1]} : vector<8x128xf32> to vector<1x128xf32>
    %c0_3 = arith.constant 0 : index
    %c0_4 = arith.constant 0 : index
    %6 = vector.load %arg2[%c0_3, %c0_4] : memref<64x32xbf16, #tpu.memory_space<vmem>>, vector<64x32xbf16>
    %7 = arith.truncf %0 : vector<16x64xf32> to vector<16x64xbf16>
    %cst = arith.constant dense<0.000000e+00> : vector<16x32xf32>
    %8 = tpu.matmul %7, %6, %cst {dimension_numbers = #tpu.dot_dimension_numbers<[1], [0], [0], [1], [0, 0, 1, 1], [], []>} : vector<16x64xbf16>, vector<64x32xbf16>, vector<16x32xf32> -> vector<16x32xf32>
    %9 = vector.broadcast %2 : vector<1x32xf32> to vector<16x32xf32>
    %10 = arith.addf %8, %9 : vector<16x32xf32>
    %c0_5 = arith.constant 0 : index
    %c0_6 = arith.constant 0 : index
    %c0_7 = arith.constant 0 : index
    %11 = vector.load %arg3[%c0_5, %c0_6, %c0_7] : memref<2x128x64xbf16, #tpu.memory_space<vmem>>, vector<1x128x64xbf16>
    %12 = vector.shape_cast %11 : vector<1x128x64xbf16> to vector<128x64xbf16>
    %c0_8 = arith.constant 0 : index
    %c0_9 = arith.constant 0 : index
    %c0_10 = arith.constant 0 : index
    %13 = vector.load %arg4[%c0_8, %c0_9, %c0_10] : memref<2x8x64xf32, #tpu.memory_space<vmem>>, vector<1x8x64xf32>
    %14 = vector.shape_cast %13 : vector<1x8x64xf32> to vector<8x64xf32>
    %15 = vector.extract_strided_slice %12 {offsets = [0, 0], sizes = [32, 32], strides = [1, 1]} : vector<128x64xbf16> to vector<32x32xbf16>
    %16 = vector.extract_strided_slice %12 {offsets = [32, 0], sizes = [32, 64], strides = [1, 1]} : vector<128x64xbf16> to vector<32x64xbf16>
    %17 = vector.extract_strided_slice %12 {offsets = [64, 0], sizes = [64, 32], strides = [1, 1]} : vector<128x64xbf16> to vector<64x32xbf16>
    %18 = vector.extract_strided_slice %14 {offsets = [0, 0], sizes = [1, 32], strides = [1, 1]} : vector<8x64xf32> to vector<1x32xf32>
    %19 = vector.extract_strided_slice %14 {offsets = [1, 0], sizes = [1, 64], strides = [1, 1]} : vector<8x64xf32> to vector<1x64xf32>
    %20 = vector.extract_strided_slice %14 {offsets = [2, 0], sizes = [1, 32], strides = [1, 1]} : vector<8x64xf32> to vector<1x32xf32>
    %21 = vector.extract_strided_slice %14 {offsets = [3, 0], sizes = [1, 32], strides = [1, 1]} : vector<8x64xf32> to vector<1x32xf32>
    %22 = vector.extract_strided_slice %14 {offsets = [4, 0], sizes = [1, 32], strides = [1, 1]} : vector<8x64xf32> to vector<1x32xf32>
    %23 = vector.extract_strided_slice %14 {offsets = [5, 0], sizes = [1, 32], strides = [1, 1]} : vector<8x64xf32> to vector<1x32xf32>
    %24 = vector.extract_strided_slice %14 {offsets = [6, 0], sizes = [1, 32], strides = [1, 1]} : vector<8x64xf32> to vector<1x32xf32>
    %25 = arith.truncf %10 : vector<16x32xf32> to vector<16x32xbf16>
    %cst_11 = arith.constant dense<0.000000e+00> : vector<16x32xf32>
    %26 = tpu.matmul %25, %15, %cst_11 {dimension_numbers = #tpu.dot_dimension_numbers<[1], [0], [0], [1], [0, 0, 1, 1], [], []>} : vector<16x32xbf16>, vector<32x32xbf16>, vector<16x32xf32> -> vector<16x32xf32>
    %27 = vector.broadcast %18 : vector<1x32xf32> to vector<16x32xf32>
    %28 = arith.addf %26, %27 : vector<16x32xf32>
    %29 = arith.addf %10, %28 : vector<16x32xf32>
    %cst_12 = arith.constant dense<0.000000e+00> : vector<16xf32>
    %30 = vector.multi_reduction <add>, %29, %cst_12 [1] : vector<16x32xf32> to vector<16xf32>
    %31 = vector.shape_cast %30 : vector<16xf32> to vector<16x1xf32>
    %cst_13 = arith.constant 3.200000e+01 : f32
    %32 = vector.broadcast %cst_13 : f32 to vector<16x1xf32>
    %33 = arith.divf %31, %32 : vector<16x1xf32>
    %34 = arith.mulf %29, %29 : vector<16x32xf32>
    %cst_14 = arith.constant dense<0.000000e+00> : vector<16xf32>
    %35 = vector.multi_reduction <add>, %34, %cst_14 [1] : vector<16x32xf32> to vector<16xf32>
    %36 = vector.shape_cast %35 : vector<16xf32> to vector<16x1xf32>
    %cst_15 = arith.constant 3.200000e+01 : f32
    %37 = vector.broadcast %cst_15 : f32 to vector<16x1xf32>
    %38 = arith.divf %36, %37 : vector<16x1xf32>
    %39 = arith.mulf %33, %33 : vector<16x1xf32>
    %40 = arith.subf %38, %39 : vector<16x1xf32>
    %41 = vector.broadcast %33 : vector<16x1xf32> to vector<16x32xf32>
    %42 = arith.subf %29, %41 : vector<16x32xf32>
    %cst_16 = arith.constant 9.99999974E-6 : f32
    %43 = vector.broadcast %cst_16 : f32 to vector<16x1xf32>
    %44 = arith.addf %40, %43 : vector<16x1xf32>
    %45 = math.rsqrt %44 : vector<16x1xf32>
    %46 = vector.broadcast %45 : vector<16x1xf32> to vector<16x32xf32>
    %47 = arith.mulf %42, %46 : vector<16x32xf32>
    %48 = vector.broadcast %21 : vector<1x32xf32> to vector<16x32xf32>
    %49 = arith.mulf %47, %48 : vector<16x32xf32>
    %50 = vector.broadcast %22 : vector<1x32xf32> to vector<16x32xf32>
    %51 = arith.addf %49, %50 : vector<16x32xf32>
    %52 = arith.truncf %51 : vector<16x32xf32> to vector<16x32xbf16>
    %cst_17 = arith.constant dense<0.000000e+00> : vector<16x64xf32>
    %53 = tpu.matmul %52, %16, %cst_17 {dimension_numbers = #tpu.dot_dimension_numbers<[1], [0], [0], [1], [0, 0, 1, 1], [], []>} : vector<16x32xbf16>, vector<32x64xbf16>, vector<16x64xf32> -> vector<16x64xf32>
    %54 = vector.broadcast %19 : vector<1x64xf32> to vector<16x64xf32>
    %55 = arith.addf %53, %54 : vector<16x64xf32>
    %cst_18 = arith.constant 0.000000e+00 : f32
    %56 = vector.broadcast %cst_18 : f32 to vector<16x64xf32>
    %57 = arith.maximumf %55, %56 : vector<16x64xf32>
    %58 = arith.truncf %57 : vector<16x64xf32> to vector<16x64xbf16>
    %cst_19 = arith.constant dense<0.000000e+00> : vector<16x32xf32>
    %59 = tpu.matmul %58, %17, %cst_19 {dimension_numbers = #tpu.dot_dimension_numbers<[1], [0], [0], [1], [0, 0, 1, 1], [], []>} : vector<16x64xbf16>, vector<64x32xbf16>, vector<16x32xf32> -> vector<16x32xf32>
    %60 = vector.broadcast %20 : vector<1x32xf32> to vector<16x32xf32>
    %61 = arith.addf %59, %60 : vector<16x32xf32>
    %62 = arith.addf %51, %61 : vector<16x32xf32>
    %cst_20 = arith.constant dense<0.000000e+00> : vector<16xf32>
    %63 = vector.multi_reduction <add>, %62, %cst_20 [1] : vector<16x32xf32> to vector<16xf32>
    %64 = vector.shape_cast %63 : vector<16xf32> to vector<16x1xf32>
    %cst_21 = arith.constant 3.200000e+01 : f32
    %65 = vector.broadcast %cst_21 : f32 to vector<16x1xf32>
    %66 = arith.divf %64, %65 : vector<16x1xf32>
    %67 = arith.mulf %62, %62 : vector<16x32xf32>
    %cst_22 = arith.constant dense<0.000000e+00> : vector<16xf32>
    %68 = vector.multi_reduction <add>, %67, %cst_22 [1] : vector<16x32xf32> to vector<16xf32>
    %69 = vector.shape_cast %68 : vector<16xf32> to vector<16x1xf32>
    %cst_23 = arith.constant 3.200000e+01 : f32
    %70 = vector.broadcast %cst_23 : f32 to vector<16x1xf32>
    %71 = arith.divf %69, %70 : vector<16x1xf32>
    %72 = arith.mulf %66, %66 : vector<16x1xf32>
    %73 = arith.subf %71, %72 : vector<16x1xf32>
    %74 = vector.broadcast %66 : vector<16x1xf32> to vector<16x32xf32>
    %75 = arith.subf %62, %74 : vector<16x32xf32>
    %cst_24 = arith.constant 9.99999974E-6 : f32
    %76 = vector.broadcast %cst_24 : f32 to vector<16x1xf32>
    %77 = arith.addf %73, %76 : vector<16x1xf32>
    %78 = math.rsqrt %77 : vector<16x1xf32>
    %79 = vector.broadcast %78 : vector<16x1xf32> to vector<16x32xf32>
    %80 = arith.mulf %75, %79 : vector<16x32xf32>
    %81 = vector.broadcast %23 : vector<1x32xf32> to vector<16x32xf32>
    %82 = arith.mulf %80, %81 : vector<16x32xf32>
    %83 = vector.broadcast %24 : vector<1x32xf32> to vector<16x32xf32>
    %84 = arith.addf %82, %83 : vector<16x32xf32>
    %c1 = arith.constant 1 : index
    %c0_25 = arith.constant 0 : index
    %c0_26 = arith.constant 0 : index
    %85 = vector.load %arg3[%c1, %c0_25, %c0_26] : memref<2x128x64xbf16, #tpu.memory_space<vmem>>, vector<1x128x64xbf16>
    %86 = vector.shape_cast %85 : vector<1x128x64xbf16> to vector<128x64xbf16>
    %c1_27 = arith.constant 1 : index
    %c0_28 = arith.constant 0 : index
    %c0_29 = arith.constant 0 : index
    %87 = vector.load %arg4[%c1_27, %c0_28, %c0_29] : memref<2x8x64xf32, #tpu.memory_space<vmem>>, vector<1x8x64xf32>
    %88 = vector.shape_cast %87 : vector<1x8x64xf32> to vector<8x64xf32>
    %89 = vector.extract_strided_slice %86 {offsets = [0, 0], sizes = [32, 32], strides = [1, 1]} : vector<128x64xbf16> to vector<32x32xbf16>
    %90 = vector.extract_strided_slice %86 {offsets = [32, 0], sizes = [32, 64], strides = [1, 1]} : vector<128x64xbf16> to vector<32x64xbf16>
    %91 = vector.extract_strided_slice %86 {offsets = [64, 0], sizes = [64, 32], strides = [1, 1]} : vector<128x64xbf16> to vector<64x32xbf16>
    %92 = vector.extract_strided_slice %88 {offsets = [0, 0], sizes = [1, 32], strides = [1, 1]} : vector<8x64xf32> to vector<1x32xf32>
    %93 = vector.extract_strided_slice %88 {offsets = [1, 0], sizes = [1, 64], strides = [1, 1]} : vector<8x64xf32> to vector<1x64xf32>
    %94 = vector.extract_strided_slice %88 {offsets = [2, 0], sizes = [1, 32], strides = [1, 1]} : vector<8x64xf32> to vector<1x32xf32>
    %95 = vector.extract_strided_slice %88 {offsets = [3, 0], sizes = [1, 32], strides = [1, 1]} : vector<8x64xf32> to vector<1x32xf32>
    %96 = vector.extract_strided_slice %88 {offsets = [4, 0], sizes = [1, 32], strides = [1, 1]} : vector<8x64xf32> to vector<1x32xf32>
    %97 = vector.extract_strided_slice %88 {offsets = [5, 0], sizes = [1, 32], strides = [1, 1]} : vector<8x64xf32> to vector<1x32xf32>
    %98 = vector.extract_strided_slice %88 {offsets = [6, 0], sizes = [1, 32], strides = [1, 1]} : vector<8x64xf32> to vector<1x32xf32>
    %99 = arith.truncf %84 : vector<16x32xf32> to vector<16x32xbf16>
    %cst_30 = arith.constant dense<0.000000e+00> : vector<16x32xf32>
    %100 = tpu.matmul %99, %89, %cst_30 {dimension_numbers = #tpu.dot_dimension_numbers<[1], [0], [0], [1], [0, 0, 1, 1], [], []>} : vector<16x32xbf16>, vector<32x32xbf16>, vector<16x32xf32> -> vector<16x32xf32>
    %101 = vector.broadcast %92 : vector<1x32xf32> to vector<16x32xf32>
    %102 = arith.addf %100, %101 : vector<16x32xf32>
    %103 = arith.addf %84, %102 : vector<16x32xf32>
    %cst_31 = arith.constant dense<0.000000e+00> : vector<16xf32>
    %104 = vector.multi_reduction <add>, %103, %cst_31 [1] : vector<16x32xf32> to vector<16xf32>
    %105 = vector.shape_cast %104 : vector<16xf32> to vector<16x1xf32>
    %cst_32 = arith.constant 3.200000e+01 : f32
    %106 = vector.broadcast %cst_32 : f32 to vector<16x1xf32>
    %107 = arith.divf %105, %106 : vector<16x1xf32>
    %108 = arith.mulf %103, %103 : vector<16x32xf32>
    %cst_33 = arith.constant dense<0.000000e+00> : vector<16xf32>
    %109 = vector.multi_reduction <add>, %108, %cst_33 [1] : vector<16x32xf32> to vector<16xf32>
    %110 = vector.shape_cast %109 : vector<16xf32> to vector<16x1xf32>
    %cst_34 = arith.constant 3.200000e+01 : f32
    %111 = vector.broadcast %cst_34 : f32 to vector<16x1xf32>
    %112 = arith.divf %110, %111 : vector<16x1xf32>
    %113 = arith.mulf %107, %107 : vector<16x1xf32>
    %114 = arith.subf %112, %113 : vector<16x1xf32>
    %115 = vector.broadcast %107 : vector<16x1xf32> to vector<16x32xf32>
    %116 = arith.subf %103, %115 : vector<16x32xf32>
    %cst_35 = arith.constant 9.99999974E-6 : f32
    %117 = vector.broadcast %cst_35 : f32 to vector<16x1xf32>
    %118 = arith.addf %114, %117 : vector<16x1xf32>
    %119 = math.rsqrt %118 : vector<16x1xf32>
    %120 = vector.broadcast %119 : vector<16x1xf32> to vector<16x32xf32>
    %121 = arith.mulf %116, %120 : vector<16x32xf32>
    %122 = vector.broadcast %95 : vector<1x32xf32> to vector<16x32xf32>
    %123 = arith.mulf %121, %122 : vector<16x32xf32>
    %124 = vector.broadcast %96 : vector<1x32xf32> to vector<16x32xf32>
    %125 = arith.addf %123, %124 : vector<16x32xf32>
    %126 = arith.truncf %125 : vector<16x32xf32> to vector<16x32xbf16>
    %cst_36 = arith.constant dense<0.000000e+00> : vector<16x64xf32>
    %127 = tpu.matmul %126, %90, %cst_36 {dimension_numbers = #tpu.dot_dimension_numbers<[1], [0], [0], [1], [0, 0, 1, 1], [], []>} : vector<16x32xbf16>, vector<32x64xbf16>, vector<16x64xf32> -> vector<16x64xf32>
    %128 = vector.broadcast %93 : vector<1x64xf32> to vector<16x64xf32>
    %129 = arith.addf %127, %128 : vector<16x64xf32>
    %cst_37 = arith.constant 0.000000e+00 : f32
    %130 = vector.broadcast %cst_37 : f32 to vector<16x64xf32>
    %131 = arith.maximumf %129, %130 : vector<16x64xf32>
    %132 = arith.truncf %131 : vector<16x64xf32> to vector<16x64xbf16>
    %cst_38 = arith.constant dense<0.000000e+00> : vector<16x32xf32>
    %133 = tpu.matmul %132, %91, %cst_38 {dimension_numbers = #tpu.dot_dimension_numbers<[1], [0], [0], [1], [0, 0, 1, 1], [], []>} : vector<16x64xbf16>, vector<64x32xbf16>, vector<16x32xf32> -> vector<16x32xf32>
    %134 = vector.broadcast %94 : vector<1x32xf32> to vector<16x32xf32>
    %135 = arith.addf %133, %134 : vector<16x32xf32>
    %136 = arith.addf %125, %135 : vector<16x32xf32>
    %cst_39 = arith.constant dense<0.000000e+00> : vector<16xf32>
    %137 = vector.multi_reduction <add>, %136, %cst_39 [1] : vector<16x32xf32> to vector<16xf32>
    %138 = vector.shape_cast %137 : vector<16xf32> to vector<16x1xf32>
    %cst_40 = arith.constant 3.200000e+01 : f32
    %139 = vector.broadcast %cst_40 : f32 to vector<16x1xf32>
    %140 = arith.divf %138, %139 : vector<16x1xf32>
    %141 = arith.mulf %136, %136 : vector<16x32xf32>
    %cst_41 = arith.constant dense<0.000000e+00> : vector<16xf32>
    %142 = vector.multi_reduction <add>, %141, %cst_41 [1] : vector<16x32xf32> to vector<16xf32>
    %143 = vector.shape_cast %142 : vector<16xf32> to vector<16x1xf32>
    %cst_42 = arith.constant 3.200000e+01 : f32
    %144 = vector.broadcast %cst_42 : f32 to vector<16x1xf32>
    %145 = arith.divf %143, %144 : vector<16x1xf32>
    %146 = arith.mulf %140, %140 : vector<16x1xf32>
    %147 = arith.subf %145, %146 : vector<16x1xf32>
    %148 = vector.broadcast %140 : vector<16x1xf32> to vector<16x32xf32>
    %149 = arith.subf %136, %148 : vector<16x32xf32>
    %cst_43 = arith.constant 9.99999974E-6 : f32
    %150 = vector.broadcast %cst_43 : f32 to vector<16x1xf32>
    %151 = arith.addf %147, %150 : vector<16x1xf32>
    %152 = math.rsqrt %151 : vector<16x1xf32>
    %153 = vector.broadcast %152 : vector<16x1xf32> to vector<16x32xf32>
    %154 = arith.mulf %149, %153 : vector<16x32xf32>
    %155 = vector.broadcast %97 : vector<1x32xf32> to vector<16x32xf32>
    %156 = arith.mulf %154, %155 : vector<16x32xf32>
    %157 = vector.broadcast %98 : vector<1x32xf32> to vector<16x32xf32>
    %158 = arith.addf %156, %157 : vector<16x32xf32>
    %cst_44 = arith.constant dense<0.000000e+00> : vector<16xf32>
    %159 = vector.multi_reduction <add>, %158, %cst_44 [1] : vector<16x32xf32> to vector<16xf32>
    %160 = vector.shape_cast %159 : vector<16xf32> to vector<16x1xf32>
    %cst_45 = arith.constant 3.200000e+01 : f32
    %161 = vector.broadcast %cst_45 : f32 to vector<16x1xf32>
    %162 = arith.divf %160, %161 : vector<16x1xf32>
    %163 = arith.mulf %158, %158 : vector<16x32xf32>
    %cst_46 = arith.constant dense<0.000000e+00> : vector<16xf32>
    %164 = vector.multi_reduction <add>, %163, %cst_46 [1] : vector<16x32xf32> to vector<16xf32>
    %165 = vector.shape_cast %164 : vector<16xf32> to vector<16x1xf32>
    %cst_47 = arith.constant 3.200000e+01 : f32
    %166 = vector.broadcast %cst_47 : f32 to vector<16x1xf32>
    %167 = arith.divf %165, %166 : vector<16x1xf32>
    %168 = arith.mulf %162, %162 : vector<16x1xf32>
    %169 = arith.subf %167, %168 : vector<16x1xf32>
    %170 = vector.broadcast %162 : vector<16x1xf32> to vector<16x32xf32>
    %171 = arith.subf %158, %170 : vector<16x32xf32>
    %cst_48 = arith.constant 9.99999974E-6 : f32
    %172 = vector.broadcast %cst_48 : f32 to vector<16x1xf32>
    %173 = arith.addf %169, %172 : vector<16x1xf32>
    %174 = math.rsqrt %173 : vector<16x1xf32>
    %175 = vector.broadcast %174 : vector<16x1xf32> to vector<16x32xf32>
    %176 = arith.mulf %171, %175 : vector<16x32xf32>
    %177 = vector.broadcast %3 : vector<1x32xf32> to vector<16x32xf32>
    %178 = arith.mulf %176, %177 : vector<16x32xf32>
    %179 = vector.broadcast %4 : vector<1x32xf32> to vector<16x32xf32>
    %180 = arith.addf %178, %179 : vector<16x32xf32>
    %c0_49 = arith.constant 0 : index
    %c0_50 = arith.constant 0 : index
    %181 = vector.load %arg6[%c0_49, %c0_50] : memref<96x128xbf16, #tpu.memory_space<vmem>>, vector<96x128xbf16>
    %182 = vector.extract_strided_slice %181 {offsets = [0, 0], sizes = [32, 128], strides = [1, 1]} : vector<96x128xbf16> to vector<32x128xbf16>
    %183 = arith.truncf %180 : vector<16x32xf32> to vector<16x32xbf16>
    %cst_51 = arith.constant dense<0.000000e+00> : vector<16x128xf32>
    %184 = tpu.matmul %183, %182, %cst_51 {dimension_numbers = #tpu.dot_dimension_numbers<[1], [0], [0], [1], [0, 0, 1, 1], [], []>} : vector<16x32xbf16>, vector<32x128xbf16>, vector<16x128xf32> -> vector<16x128xf32>
    %185 = vector.extract_strided_slice %181 {offsets = [32, 0], sizes = [64, 128], strides = [1, 1]} : vector<96x128xbf16> to vector<64x128xbf16>
    %186 = arith.truncf %0 : vector<16x64xf32> to vector<16x64xbf16>
    %cst_52 = arith.constant dense<0.000000e+00> : vector<16x128xf32>
    %187 = tpu.matmul %186, %185, %cst_52 {dimension_numbers = #tpu.dot_dimension_numbers<[1], [0], [0], [1], [0, 0, 1, 1], [], []>} : vector<16x64xbf16>, vector<64x128xbf16>, vector<16x128xf32> -> vector<16x128xf32>
    %188 = arith.addf %184, %187 : vector<16x128xf32>
    %189 = vector.broadcast %5 : vector<1x128xf32> to vector<16x128xf32>
    %190 = arith.addf %188, %189 : vector<16x128xf32>
    %c0_53 = arith.constant 0 : index
    %c0_54 = arith.constant 0 : index
    %191 = vector.load %arg7[%c0_53, %c0_54] : memref<16x128xf32, #tpu.memory_space<vmem>>, vector<16x128xf32>
    tpu.vector_store %arg7[%c0_53, %c0_54], %190 {strides = array<i32>} : memref<16x128xf32, #tpu.memory_space<vmem>>, vector<16x128xf32>,
    return
  }
  func.func @transform_0(%arg0: i32) -> (i32, i32) {
    %c0_i32 = arith.constant 0 : i32
    %c0_i32_0 = arith.constant 0 : i32
    return %arg0, %c0_i32 : i32, i32
  }
  func.func @transform_1(%arg0: i32) -> (i32, i32) {
    %c0_i32 = arith.constant 0 : i32
    %c0_i32_0 = arith.constant 0 : i32
    %c0_i32_1 = arith.constant 0 : i32
    return %c0_i32, %c0_i32_0 : i32, i32
  }
  func.func @transform_2(%arg0: i32) -> (i32, i32, i32) {
    %c0_i32 = arith.constant 0 : i32
    %c0_i32_0 = arith.constant 0 : i32
    %c0_i32_1 = arith.constant 0 : i32
    %c0_i32_2 = arith.constant 0 : i32
    return %c0_i32, %c0_i32_0, %c0_i32_1 : i32, i32, i32
  }
  func.func @transform_3(%arg0: i32) -> (i32, i32, i32) {
    %c0_i32 = arith.constant 0 : i32
    %c0_i32_0 = arith.constant 0 : i32
    %c0_i32_1 = arith.constant 0 : i32
    %c0_i32_2 = arith.constant 0 : i32
    return %c0_i32, %c0_i32_0, %c0_i32_1 : i32, i32, i32
  }
  func.func @transform_4(%arg0: i32) -> (i32, i32) {
    %c0_i32 = arith.constant 0 : i32
    %c0_i32_0 = arith.constant 0 : i32
    %c0_i32_1 = arith.constant 0 : i32
    return %c0_i32, %c0_i32_0 : i32, i32
  }
  func.func @transform_5(%arg0: i32) -> (i32, i32) {
    %c0_i32 = arith.constant 0 : i32
    %c0_i32_0 = arith.constant 0 : i32
    %c0_i32_1 = arith.constant 0 : i32
    return %c0_i32, %c0_i32_0 : i32, i32
  }
  func.func @transform_6(%arg0: i32) -> (i32, i32) {
    %c0_i32 = arith.constant 0 : i32
    %c0_i32_0 = arith.constant 0 : i32
    return %arg0, %c0_i32 : i32, i32
  }
}

</mosaic_0001>

<llo_original>
// kernel: tpu_custom_call.1
$region0: #{tpu_custom_call.1}
  #allocation0 [shape = 'u32[]', space=smem, size = 0x4, offset = 0x4, fixed_abs, tag = 'smem constant byte address 0x4 - core index']
  #allocation1 [shape = 'u32[72,128]{1,0:T(1,128)}', space=vmem, size = 0x9000, scoped, tag = 'internal scratch']
  %s0 = inlined_call_operand.vmem [shape: f32[16,64], index: 0, kind: input, shape index: {}]
  %s1 = inlined_call_operand.vmem [shape: bf16[64,32], index: 1, kind: input, shape index: {}]
  %s2 = inlined_call_operand.vmem [shape: bf16[2,128,64], index: 2, kind: input, shape index: {}]
  %s3 = inlined_call_operand.vmem [shape: f32[2,8,64], index: 3, kind: input, shape index: {}]
  %s4 = inlined_call_operand.vmem [shape: f32[8,128], index: 4, kind: input, shape index: {}]
  %s5 = inlined_call_operand.vmem [shape: bf16[96,128], index: 5, kind: input, shape index: {}]
  %s6 = inlined_call_operand.hbm [shape: f32[16,128], index: 6, kind: output, shape index: {}]
  %s7 = sld [smem:[#allocation0]]
  $region34: #{tpu_custom_call.1} parent=0
    _
  %s9 = ssub.s32 1, %s7
  %s10 = scalar_select 0, %s9, %s7
  $region1: #{tpu_custom_call.1} parent=0
    #allocation2 [shape = 'u8[8192]{0}', space=vmem, size = 0x2000, scoped, tag = 'output window, operand 0, single buffered']
    #allocation3 [shape = 's32[1]{0}', space=sflag, size = 0x4, scoped, tag = 'scoped memory for tpu_custom_call.1']
    %11 = vsyncpa [#allocation3], 0
    // Predicated region
    $region2: #{tpu_custom_call.1} parent=1 // pred_check
      _
    $region3: #{tpu_custom_call.1} parent=1 // pred_check_branch
      %13 = sbr.rel (0) target = $region5
    $region4: #{tpu_custom_call.1} parent=1 // pred_region
      _
    $region5: #{tpu_custom_call.1} parent=1 // pred_fallthru
      _
    // Predicated region
    $region6: #{tpu_custom_call.1} parent=1 // pred_check
      _
    $region7: #{tpu_custom_call.1} parent=1 // pred_check_branch
      %15 = sbr.rel (0) target = $region9
    $region8: #{tpu_custom_call.1} parent=1 // pred_region
      _
    $region9: #{tpu_custom_call.1} parent=1 // pred_fallthru
      _
    // Predicated region
    $region10: #{tpu_custom_call.1} parent=1 // pred_check
      _
    $region11: #{tpu_custom_call.1} parent=1 // pred_check_branch
      %17 = sbr.rel (0) target = $region13
    $region12: #{tpu_custom_call.1} parent=1 // pred_region
      _
    $region13: #{tpu_custom_call.1} parent=1 // pred_fallthru
      _
    // Predicated region
    $region14: #{tpu_custom_call.1} parent=1 // pred_check
      _
    $region15: #{tpu_custom_call.1} parent=1 // pred_check_branch
      %19 = sbr.rel (0) target = $region17
    $region16: #{tpu_custom_call.1} parent=1 // pred_region
      _
    $region17: #{tpu_custom_call.1} parent=1 // pred_fallthru
      _
    // Predicated region
    $region18: #{tpu_custom_call.1} parent=1 // pred_check
      _
    $region19: #{tpu_custom_call.1} parent=1 // pred_check_branch
      %21 = sbr.rel (0) target = $region21
    $region20: #{tpu_custom_call.1} parent=1 // pred_region
      _
    $region21: #{tpu_custom_call.1} parent=1 // pred_fallthru
      _
    // Predicated region
    $region22: #{tpu_custom_call.1} parent=1 // pred_check
      _
    $region23: #{tpu_custom_call.1} parent=1 // pred_check_branch
      %23 = sbr.rel (0) target = $region25
    $region24: #{tpu_custom_call.1} parent=1 // pred_region
      _
    $region25: #{tpu_custom_call.1} parent=1 // pred_fallthru
      _
    %v25 = vld [vmem:[%s0] sm:$0xff]
    %v26 = vld [vmem:[%s0 + $0x8] sm:$0xff]
    %v27 = vld [vmem:[%s4] sm:$0xff]
    %v28 = vld [vmem:[%s1] sm:$0xf]
    %v29 = vld [vmem:[%s1 + $0x4] sm:$0xf]
    %v30 = vld [vmem:[%s1 + $0x8] sm:$0xf]
    %v31 = vld [vmem:[%s1 + $0xc] sm:$0xf]
    %v32 = vld [vmem:[%s1 + $0x10] sm:$0xf]
    %v33 = vld [vmem:[%s1 + $0x14] sm:$0xf]
    %v34 = vld [vmem:[%s1 + $0x18] sm:$0xf]
    %v35 = vld [vmem:[%s1 + $0x1c] sm:$0xf]
    %v36 = vpack.c.bf16 %v26, %v25
    %v37 = vperm.slane %v27, 0
    %v46 = vunpack.c.l.b16 %v28
    %v47 = vunpack.c.l.b16 %v29
    %v48 = vunpack.c.l.b16 %v30
    %v49 = vunpack.c.l.b16 %v31
    %v50 = vunpack.c.l.b16 %v32
    %v51 = vunpack.c.l.b16 %v33
    %v52 = vunpack.c.l.b16 %v34
    %v53 = vunpack.c.l.b16 %v35
    %v54 = vpack.c.b16 %v47, %v46
    %v55 = vpack.c.b16 %v49, %v48
    %v56 = vpack.c.b16 %v51, %v50
    %v57 = vpack.c.b16 %v53, %v52
    %vm62 = vcmask 523264
    %v64 = vsel %vm62, %v36, 0
    %66 = vmatpush.bf16.msra.mxu0 0
    %67 = vmatpush.bf16.msra.mxu0 0
    %68 = vmatpush.bf16.msra.mxu0 0
    %69 = vmatpush.bf16.msra.mxu0 0
    %70 = vmatpush.bf16.msra.mxu0 %v57
    %71 = vmatpush.bf16.msra.mxu0 %v56
    %72 = vmatpush.bf16.msra.mxu0 %v55
    %73 = vmatpush.bf16.msra.mxu0 %v54
    %74 = vmatmul.bf16.gmra.mxu0 %v64
    %v75 = vpop.f32.mrf.mxu0
    %v76 = vadd.f32 %v37, %v75
    %v77 = vpop.f32.mrf.mxu0
    %v78 = vadd.f32 %v37, %v77
    %79 = vdwg.mxu0
    %v80 = vld [vmem:[%s2] sm:$0xf]
    %v81 = vld [vmem:[%s2 + $0x4] sm:$0xf]
    %v82 = vld [vmem:[%s2 + $0x8] sm:$0xf]
    %v83 = vld [vmem:[%s2 + $0xc] sm:$0xf]
    %v84 = vld [vmem:[%s2 + $0x10] sm:$0xf]
    %v85 = vld [vmem:[%s2 + $0x14] sm:$0xf]
    %v86 = vld [vmem:[%s2 + $0x18] sm:$0xf]
    %v87 = vld [vmem:[%s2 + $0x1c] sm:$0xf]
    %v88 = vld [vmem:[%s2 + $0x20] sm:$0xf]
    %v89 = vld [vmem:[%s2 + $0x24] sm:$0xf]
    %v90 = vld [vmem:[%s2 + $0x28] sm:$0xf]
    %v91 = vld [vmem:[%s2 + $0x2c] sm:$0xf]
    %v92 = vld [vmem:[%s2 + $0x30] sm:$0xf]
    %v93 = vld [vmem:[%s2 + $0x34] sm:$0xf]
    %v94 = vld [vmem:[%s2 + $0x38] sm:$0xf]
    %v95 = vld [vmem:[%s2 + $0x3c] sm:$0xf]
    %v96 = vld [vmem:[%s3] sm:$0xff]
    %v97 = vpack.c.bf16 %v78, %v76
    %v98 = vperm.slane %v96, 0
    %v103 = vunpack.c.l.b16 %v80
    %v104 = vunpack.c.l.b16 %v81
    %v105 = vunpack.c.l.b16 %v82
    %v106 = vunpack.c.l.b16 %v83
    %v107 = vpack.c.b16 %v104, %v103
    %v108 = vpack.c.b16 %v106, %v105
    %vm111 = vcmask 261120
    %v113 = vsel %vm111, %v97, 0
    %115 = vmatpush.bf16.msra.mxu0 0
    %116 = vmatpush.bf16.msra.mxu0 0
    %117 = vmatpush.bf16.msra.mxu0 0
    %118 = vmatpush.bf16.msra.mxu0 0
    %119 = vmatpush.bf16.msra.mxu0 0
    %120 = vmatpush.bf16.msra.mxu0 0
    %121 = vmatpush.bf16.msra.mxu0 %v108
    %122 = vmatpush.bf16.msra.mxu0 %v107
    %123 = vmatmul.bf16.gmra.mxu0 %v113
    %v124 = vpop.f32.mrf.mxu0
    %v125 = vadd.f32 %v98, %v124
    %v126 = vpop.f32.mrf.mxu0
    %v127 = vadd.f32 %v98, %v126
    %128 = vdwg.mxu0
    %v129 = vadd.f32 %v76, %v125
    %v130 = vadd.f32 %v78, %v127
    %v131 = vsel %vm111, %v129, 0.0
    %132 = vadd.xlane.f32.xlu0 %v131
    %v133 = vpop.xlane.xlu0 %132
    %v134 = vsel %vm111, %v130, 0.0
    %135 = vadd.xlane.f32.xlu0 %v134
    %v136 = vpop.xlane.xlu0 %135
    %v137 = vrcp.pop 32.0
    %v138 = vmul.f32 32.0, %v137
    %v139 = vsub.f32 1.0, %v138
    %v140 = vmul.f32 %v137, %v139
    %v141 = vadd.f32 %v137, %v140
    %vm142 = vweird.f32 %v137
    %v143 = vsel %vm142, %v137, %v141
    %v144 = vmul.f32 %v133, %v143
    %v145 = vmul.f32 %v136, %v143
    %v146 = vmul.f32 %v129, %v129
    %v147 = vmul.f32 %v130, %v130
    %v148 = vsel %vm111, %v146, 0.0
    %149 = vadd.xlane.f32.xlu0 %v148
    %v150 = vpop.xlane.xlu0 %149
    %v151 = vsel %vm111, %v147, 0.0
    %152 = vadd.xlane.f32.xlu0 %v151
    %v153 = vpop.xlane.xlu0 %152
    %v154 = vmul.f32 %v150, %v143
    %v155 = vmul.f32 %v153, %v143
    %v156 = vmul.f32 %v144, %v144
    %v157 = vmul.f32 %v145, %v145
    %v158 = vsub.f32 %v154, %v156
    %v159 = vsub.f32 %v155, %v157
    %v160 = vsub.f32 %v129, %v144
    %v161 = vsub.f32 %v130, %v145
    %v162 = vadd.f32 %v158, 1e-05
    %v163 = vadd.f32 %v159, 1e-05
    %v164 = vrsqrt.pop %v162
    %v165 = vmul.f32 %v164, %v162
    %v166 = vmul.f32 %v165, %v164
    %v167 = vmul.f32 0.5, %v166
    %v168 = vsub.f32 1.5, %v167
    %v169 = vmul.f32 %v164, %v168
    %vm170 = vweird.f32 %v162
    %vm171 = vweird.f32 %v164
    %vm172 = vmor %vm170, %vm171
    %v173 = vsel %vm172, %v164, %v169
    %v174 = vrsqrt.pop %v163
    %v175 = vmul.f32 %v174, %v163
    %v176 = vmul.f32 %v175, %v174
    %v177 = vmul.f32 0.5, %v176
    %v178 = vsub.f32 1.5, %v177
    %v179 = vmul.f32 %v174, %v178
    %vm180 = vweird.f32 %v163
    %vm181 = vweird.f32 %v174
    %vm182 = vmor %vm180, %vm181
    %v183 = vsel %vm182, %v174, %v179
    %v184 = vmul.f32 %v160, %v173
    %v185 = vmul.f32 %v161, %v183
    %v186 = vperm.slane %v96, 3
    %v187 = vmul.f32 %v184, %v186
    %v188 = vmul.f32 %v185, %v186
    %v189 = vperm.slane %v96, 4
    %v190 = vadd.f32 %v187, %v189
    %v191 = vadd.f32 %v188, %v189
    %v192 = vpack.c.bf16 %v191, %v190
    %v193 = vperm.slane %v96, 1
    %v198 = vunpack.c.l.b16 %v84
    %v199 = vunpack.c.l.b16 %v85
    %v200 = vunpack.c.l.b16 %v86
    %v201 = vunpack.c.l.b16 %v87
    %v202 = vpack.c.b16 %v199, %v198
    %v203 = vpack.c.b16 %v201, %v200
    %v207 = vsel %vm111, %v192, 0
    %209 = vmatpush.bf16.msra.mxu0 0
    %210 = vmatpush.bf16.msra.mxu0 0
    %211 = vmatpush.bf16.msra.mxu0 0
    %212 = vmatpush.bf16.msra.mxu0 0
    %213 = vmatpush.bf16.msra.mxu0 0
    %214 = vmatpush.bf16.msra.mxu0 0
    %215 = vmatpush.bf16.msra.mxu0 %v203
    %216 = vmatpush.bf16.msra.mxu0 %v202
    %217 = vmatmul.bf16.gmra.mxu0 %v207
    %v218 = vpop.f32.mrf.mxu0
    %v219 = vadd.f32 %v193, %v218
    %v220 = vpop.f32.mrf.mxu0
    %v221 = vadd.f32 %v193, %v220
    %222 = vdwg.mxu0
    %v223 = vmax.f32 %v219, 0.0
    %v224 = vmax.f32 %v221, 0.0
    %v225 = vpack.c.bf16 %v224, %v223
    %v226 = vperm.slane %v96, 2
    %v235 = vunpack.c.l.b16 %v88
    %v236 = vunpack.c.l.b16 %v89
    %v237 = vunpack.c.l.b16 %v90
    %v238 = vunpack.c.l.b16 %v91
    %v239 = vunpack.c.l.b16 %v92
    %v240 = vunpack.c.l.b16 %v93
    %v241 = vunpack.c.l.b16 %v94
    %v242 = vunpack.c.l.b16 %v95
    %v243 = vpack.c.b16 %v236, %v235
    %v244 = vpack.c.b16 %v238, %v237
    %v245 = vpack.c.b16 %v240, %v239
    %v246 = vpack.c.b16 %v242, %v241
    %v252 = vsel %vm62, %v225, 0
    %254 = vmatpush.bf16.msra.mxu0 0
    %255 = vmatpush.bf16.msra.mxu0 0
    %256 = vmatpush.bf16.msra.mxu0 0
    %257 = vmatpush.bf16.msra.mxu0 0
    %258 = vmatpush.bf16.msra.mxu0 %v246
    %259 = vmatpush.bf16.msra.mxu0 %v245
    %260 = vmatpush.bf16.msra.mxu0 %v244
    %261 = vmatpush.bf16.msra.mxu0 %v243
    %262 = vmatmul.bf16.gmra.mxu0 %v252
    %v263 = vpop.f32.mrf.mxu0
    %v264 = vadd.f32 %v226, %v263
    %v265 = vpop.f32.mrf.mxu0
    %v266 = vadd.f32 %v226, %v265
    %267 = vdwg.mxu0
    %v268 = vadd.f32 %v190, %v264
    %v269 = vadd.f32 %v191, %v266
    %v270 = vsel %vm111, %v268, 0.0
    %271 = vadd.xlane.f32.xlu0 %v270
    %v272 = vpop.xlane.xlu0 %271
    %v273 = vsel %vm111, %v269, 0.0
    %274 = vadd.xlane.f32.xlu0 %v273
    %v275 = vpop.xlane.xlu0 %274
    %v276 = vmul.f32 %v272, %v143
    %v277 = vmul.f32 %v275, %v143
    %v278 = vmul.f32 %v268, %v268
    %v279 = vmul.f32 %v269, %v269
    %v280 = vsel %vm111, %v278, 0.0
    %281 = vadd.xlane.f32.xlu0 %v280
    %v282 = vpop.xlane.xlu0 %281
    %v283 = vsel %vm111, %v279, 0.0
    %284 = vadd.xlane.f32.xlu0 %v283
    %v285 = vpop.xlane.xlu0 %284
    %v286 = vmul.f32 %v282, %v143
    %v287 = vmul.f32 %v285, %v143
    %v288 = vmul.f32 %v276, %v276
    %v289 = vmul.f32 %v277, %v277
    %v290 = vsub.f32 %v286, %v288
    %v291 = vsub.f32 %v287, %v289
    %v292 = vsub.f32 %v268, %v276
    %v293 = vsub.f32 %v269, %v277
    %v294 = vadd.f32 %v290, 1e-05
    %v295 = vadd.f32 %v291, 1e-05
    %v296 = vrsqrt.pop %v294
    %v297 = vmul.f32 %v296, %v294
    %v298 = vmul.f32 %v297, %v296
    %v299 = vmul.f32 0.5, %v298
    %v300 = vsub.f32 1.5, %v299
    %v301 = vmul.f32 %v296, %v300
    %vm302 = vweird.f32 %v294
    %vm303 = vweird.f32 %v296
    %vm304 = vmor %vm302, %vm303
    %v305 = vsel %vm304, %v296, %v301
    %v306 = vrsqrt.pop %v295
    %v307 = vmul.f32 %v306, %v295
    %v308 = vmul.f32 %v307, %v306
    %v309 = vmul.f32 0.5, %v308
    %v310 = vsub.f32 1.5, %v309
    %v311 = vmul.f32 %v306, %v310
    %vm312 = vweird.f32 %v295
    %vm313 = vweird.f32 %v306
    %vm314 = vmor %vm312, %vm313
    %v315 = vsel %vm314, %v306, %v311
    %v316 = vmul.f32 %v292, %v305
    %v317 = vmul.f32 %v293, %v315
    %v318 = vperm.slane %v96, 5
    %v319 = vmul.f32 %v316, %v318
    %v320 = vmul.f32 %v317, %v318
    %v321 = vperm.slane %v96, 6
    %v322 = vadd.f32 %v319, %v321
    %v323 = vadd.f32 %v320, %v321
    %s324 = scalar_lea.vmem %s2, 64
    %v325 = vld [vmem:[%s324] sm:$0xf]
    %v326 = vld [vmem:[%s324 + $0x4] sm:$0xf]
    %v327 = vld [vmem:[%s324 + $0x8] sm:$0xf]
    %v328 = vld [vmem:[%s324 + $0xc] sm:$0xf]
    %v329 = vld [vmem:[%s324 + $0x10] sm:$0xf]
    %v330 = vld [vmem:[%s324 + $0x14] sm:$0xf]
    %v331 = vld [vmem:[%s324 + $0x18] sm:$0xf]
    %v332 = vld [vmem:[%s324 + $0x1c] sm:$0xf]
    %v333 = vld [vmem:[%s324 + $0x20] sm:$0xf]
    %v334 = vld [vmem:[%s324 + $0x24] sm:$0xf]
    %v335 = vld [vmem:[%s324 + $0x28] sm:$0xf]
    %v336 = vld [vmem:[%s324 + $0x2c] sm:$0xf]
    %v337 = vld [vmem:[%s324 + $0x30] sm:$0xf]
    %v338 = vld [vmem:[%s324 + $0x34] sm:$0xf]
    %v339 = vld [vmem:[%s324 + $0x38] sm:$0xf]
    %v340 = vld [vmem:[%s324 + $0x3c] sm:$0xf]
    %s341 = scalar_lea.vmem %s3, 8
    %v342 = vld [vmem:[%s341] sm:$0xff]
    %v343 = vpack.c.bf16 %v323, %v322
    %v344 = vperm.slane %v342, 0
    %v349 = vunpack.c.l.b16 %v325
    %v350 = vunpack.c.l.b16 %v326
    %v351 = vunpack.c.l.b16 %v327
    %v352 = vunpack.c.l.b16 %v328
    %v353 = vpack.c.b16 %v350, %v349
    %v354 = vpack.c.b16 %v352, %v351
    %v358 = vsel %vm111, %v343, 0
    %360 = vmatpush.bf16.msra.mxu0 0
    %361 = vmatpush.bf16.msra.mxu0 0
    %362 = vmatpush.bf16.msra.mxu0 0
    %363 = vmatpush.bf16.msra.mxu0 0
    %364 = vmatpush.bf16.msra.mxu0 0
    %365 = vmatpush.bf16.msra.mxu0 0
    %366 = vmatpush.bf16.msra.mxu0 %v354
    %367 = vmatpush.bf16.msra.mxu0 %v353
    %368 = vmatmul.bf16.gmra.mxu0 %v358
    %v369 = vpop.f32.mrf.mxu0
    %v370 = vadd.f32 %v344, %v369
    %v371 = vpop.f32.mrf.mxu0
    %v372 = vadd.f32 %v344, %v371
    %373 = vdwg.mxu0
    %v374 = vadd.f32 %v322, %v370
    %v375 = vadd.f32 %v323, %v372
    %v376 = vsel %vm111, %v374, 0.0
    %377 = vadd.xlane.f32.xlu0 %v376
    %v378 = vpop.xlane.xlu0 %377
    %v379 = vsel %vm111, %v375, 0.0
    %380 = vadd.xlane.f32.xlu0 %v379
    %v381 = vpop.xlane.xlu0 %380
    %v382 = vmul.f32 %v378, %v143
    %v383 = vmul.f32 %v381, %v143
    %v384 = vmul.f32 %v374, %v374
    %v385 = vmul.f32 %v375, %v375
    %v386 = vsel %vm111, %v384, 0.0
    %387 = vadd.xlane.f32.xlu0 %v386
    %v388 = vpop.xlane.xlu0 %387
    %v389 = vsel %vm111, %v385, 0.0
    %390 = vadd.xlane.f32.xlu0 %v389
    %v391 = vpop.xlane.xlu0 %390
    %v392 = vmul.f32 %v388, %v143
    %v393 = vmul.f32 %v391, %v143
    %v394 = vmul.f32 %v382, %v382
    %v395 = vmul.f32 %v383, %v383
    %v396 = vsub.f32 %v392, %v394
    %v397 = vsub.f32 %v393, %v395
    %v398 = vsub.f32 %v374, %v382
    %v399 = vsub.f32 %v375, %v383
    %v400 = vadd.f32 %v396, 1e-05
    %v401 = vadd.f32 %v397, 1e-05
    %v402 = vrsqrt.pop %v400
    %v403 = vmul.f32 %v402, %v400
    %v404 = vmul.f32 %v403, %v402
    %v405 = vmul.f32 0.5, %v404
    %v406 = vsub.f32 1.5, %v405
    %v407 = vmul.f32 %v402, %v406
    %vm408 = vweird.f32 %v400
    %vm409 = vweird.f32 %v402
    %vm410 = vmor %vm408, %vm409
    %v411 = vsel %vm410, %v402, %v407
    %v412 = vrsqrt.pop %v401
    %v413 = vmul.f32 %v412, %v401
    %v414 = vmul.f32 %v413, %v412
    %v415 = vmul.f32 0.5, %v414
    %v416 = vsub.f32 1.5, %v415
    %v417 = vmul.f32 %v412, %v416
    %vm418 = vweird.f32 %v401
    %vm419 = vweird.f32 %v412
    %vm420 = vmor %vm418, %vm419
    %v421 = vsel %vm420, %v412, %v417
    %v422 = vmul.f32 %v398, %v411
    %v423 = vmul.f32 %v399, %v421
    %v424 = vperm.slane %v342, 3
    %v425 = vmul.f32 %v422, %v424
    %v426 = vmul.f32 %v423, %v424
    %v427 = vperm.slane %v342, 4
    %v428 = vadd.f32 %v425, %v427
    %v429 = vadd.f32 %v426, %v427
    %v430 = vpack.c.bf16 %v429, %v428
    %v431 = vperm.slane %v342, 1
    %v436 = vunpack.c.l.b16 %v329
    %v437 = vunpack.c.l.b16 %v330
    %v438 = vunpack.c.l.b16 %v331
    %v439 = vunpack.c.l.b16 %v332
    %v440 = vpack.c.b16 %v437, %v436
    %v441 = vpack.c.b16 %v439, %v438
    %v445 = vsel %vm111, %v430, 0
    %447 = vmatpush.bf16.msra.mxu0 0
    %448 = vmatpush.bf16.msra.mxu0 0
    %449 = vmatpush.bf16.msra.mxu0 0
    %450 = vmatpush.bf16.msra.mxu0 0
    %451 = vmatpush.bf16.msra.mxu0 0
    %452 = vmatpush.bf16.msra.mxu0 0
    %453 = vmatpush.bf16.msra.mxu0 %v441
    %454 = vmatpush.bf16.msra.mxu0 %v440
    %455 = vmatmul.bf16.gmra.mxu0 %v445
    %v456 = vpop.f32.mrf.mxu0
    %v457 = vadd.f32 %v431, %v456
    %v458 = vpop.f32.mrf.mxu0
    %v459 = vadd.f32 %v431, %v458
    %460 = vdwg.mxu0
    %v461 = vmax.f32 %v457, 0.0
    %v462 = vmax.f32 %v459, 0.0
    %v463 = vpack.c.bf16 %v462, %v461
    %v464 = vperm.slane %v342, 2
    %v473 = vunpack.c.l.b16 %v333
    %v474 = vunpack.c.l.b16 %v334
    %v475 = vunpack.c.l.b16 %v335
    %v476 = vunpack.c.l.b16 %v336
    %v477 = vunpack.c.l.b16 %v337
    %v478 = vunpack.c.l.b16 %v338
    %v479 = vunpack.c.l.b16 %v339
    %v480 = vunpack.c.l.b16 %v340
    %v481 = vpack.c.b16 %v474, %v473
    %v482 = vpack.c.b16 %v476, %v475
    %v483 = vpack.c.b16 %v478, %v477
    %v484 = vpack.c.b16 %v480, %v479
    %v490 = vsel %vm62, %v463, 0
    %492 = vmatpush.bf16.msra.mxu0 0
    %493 = vmatpush.bf16.msra.mxu0 0
    %494 = vmatpush.bf16.msra.mxu0 0
    %495 = vmatpush.bf16.msra.mxu0 0
    %496 = vmatpush.bf16.msra.mxu0 %v484
    %497 = vmatpush.bf16.msra.mxu0 %v483
    %498 = vmatpush.bf16.msra.mxu0 %v482
    %499 = vmatpush.bf16.msra.mxu0 %v481
    %500 = vmatmul.bf16.gmra.mxu0 %v490
    %v501 = vpop.f32.mrf.mxu0
    %v502 = vadd.f32 %v464, %v501
    %v503 = vpop.f32.mrf.mxu0
    %v504 = vadd.f32 %v464, %v503
    %505 = vdwg.mxu0
    %v506 = vadd.f32 %v428, %v502
    %v507 = vadd.f32 %v429, %v504
    %v508 = vsel %vm111, %v506, 0.0
    %509 = vadd.xlane.f32.xlu0 %v508
    %v510 = vpop.xlane.xlu0 %509
    %v511 = vsel %vm111, %v507, 0.0
    %512 = vadd.xlane.f32.xlu0 %v511
    %v513 = vpop.xlane.xlu0 %512
    %v514 = vmul.f32 %v510, %v143
    %v515 = vmul.f32 %v513, %v143
    %v516 = vmul.f32 %v506, %v506
    %v517 = vmul.f32 %v507, %v507
    %v518 = vsel %vm111, %v516, 0.0
    %519 = vadd.xlane.f32.xlu0 %v518
    %v520 = vpop.xlane.xlu0 %519
    %v521 = vsel %vm111, %v517, 0.0
    %522 = vadd.xlane.f32.xlu0 %v521
    %v523 = vpop.xlane.xlu0 %522
    %v524 = vmul.f32 %v520, %v143
    %v525 = vmul.f32 %v523, %v143
    %v526 = vmul.f32 %v514, %v514
    %v527 = vmul.f32 %v515, %v515
    %v528 = vsub.f32 %v524, %v526
    %v529 = vsub.f32 %v525, %v527
    %v530 = vsub.f32 %v506, %v514
    %v531 = vsub.f32 %v507, %v515
    %v532 = vadd.f32 %v528, 1e-05
    %v533 = vadd.f32 %v529, 1e-05
    %v534 = vrsqrt.pop %v532
    %v535 = vmul.f32 %v534, %v532
    %v536 = vmul.f32 %v535, %v534
    %v537 = vmul.f32 0.5, %v536
    %v538 = vsub.f32 1.5, %v537
    %v539 = vmul.f32 %v534, %v538
    %vm540 = vweird.f32 %v532
    %vm541 = vweird.f32 %v534
    %vm542 = vmor %vm540, %vm541
    %v543 = vsel %vm542, %v534, %v539
    %v544 = vrsqrt.pop %v533
    %v545 = vmul.f32 %v544, %v533
    %v546 = vmul.f32 %v545, %v544
    %v547 = vmul.f32 0.5, %v546
    %v548 = vsub.f32 1.5, %v547
    %v549 = vmul.f32 %v544, %v548
    %vm550 = vweird.f32 %v533
    %vm551 = vweird.f32 %v544
    %vm552 = vmor %vm550, %vm551
    %v553 = vsel %vm552, %v544, %v549
    %v554 = vmul.f32 %v530, %v543
    %v555 = vmul.f32 %v531, %v553
    %v556 = vperm.slane %v342, 5
    %v557 = vmul.f32 %v554, %v556
    %v558 = vmul.f32 %v555, %v556
    %v559 = vperm.slane %v342, 6
    %v560 = vadd.f32 %v557, %v559
    %v561 = vadd.f32 %v558, %v559
    %v562 = vsel %vm111, %v560, 0.0
    %563 = vadd.xlane.f32.xlu0 %v562
    %v564 = vpop.xlane.xlu0 %563
    %v565 = vsel %vm111, %v561, 0.0
    %566 = vadd.xlane.f32.xlu0 %v565
    %v567 = vpop.xlane.xlu0 %566
    %v568 = vmul.f32 %v564, %v143
    %v569 = vmul.f32 %v567, %v143
    %v570 = vmul.f32 %v560, %v560
    %v571 = vmul.f32 %v561, %v561
    %v572 = vsel %vm111, %v570, 0.0
    %573 = vadd.xlane.f32.xlu0 %v572
    %v574 = vpop.xlane.xlu0 %573
    %v575 = vsel %vm111, %v571, 0.0
    %576 = vadd.xlane.f32.xlu0 %v575
    %v577 = vpop.xlane.xlu0 %576
    %v578 = vmul.f32 %v574, %v143
    %v579 = vmul.f32 %v577, %v143
    %v580 = vmul.f32 %v568, %v568
    %v581 = vmul.f32 %v569, %v569
    %v582 = vsub.f32 %v578, %v580
    %v583 = vsub.f32 %v579, %v581
    %v584 = vsub.f32 %v560, %v568
    %v585 = vsub.f32 %v561, %v569
    %v586 = vadd.f32 %v582, 1e-05
    %v587 = vadd.f32 %v583, 1e-05
    %v588 = vrsqrt.pop %v586
    %v589 = vmul.f32 %v588, %v586
    %v590 = vmul.f32 %v589, %v588
    %v591 = vmul.f32 0.5, %v590
    %v592 = vsub.f32 1.5, %v591
    %v593 = vmul.f32 %v588, %v592
    %vm594 = vweird.f32 %v586
    %vm595 = vweird.f32 %v588
    %vm596 = vmor %vm594, %vm595
    %v597 = vsel %vm596, %v588, %v593
    %v598 = vrsqrt.pop %v587
    %v599 = vmul.f32 %v598, %v587
    %v600 = vmul.f32 %v599, %v598
    %v601 = vmul.f32 0.5, %v600
    %v602 = vsub.f32 1.5, %v601
    %v603 = vmul.f32 %v598, %v602
    %vm604 = vweird.f32 %v587
    %vm605 = vweird.f32 %v598
    %vm606 = vmor %vm604, %vm605
    %v607 = vsel %vm606, %v598, %v603
    %v608 = vmul.f32 %v584, %v597
    %v609 = vmul.f32 %v585, %v607
    %v610 = vperm.slane %v27, 1
    %v611 = vmul.f32 %v608, %v610
    %v612 = vmul.f32 %v609, %v610
    %v613 = vperm.slane %v27, 2
    %v614 = vadd.f32 %v611, %v613
    %v615 = vadd.f32 %v612, %v613
    %v616 = vld [vmem:[%s5] sm:$0xf]
    %v617 = vld [vmem:[%s5 + $0x4] sm:$0xf]
    %v618 = vld [vmem:[%s5 + $0x8] sm:$0xf]
    %v619 = vld [vmem:[%s5 + $0xc] sm:$0xf]
    %v620 = vld [vmem:[%s5 + $0x10] sm:$0xf]
    %v621 = vld [vmem:[%s5 + $0x14] sm:$0xf]
    %v622 = vld [vmem:[%s5 + $0x18] sm:$0xf]
    %v623 = vld [vmem:[%s5 + $0x1c] sm:$0xf]
    %v624 = vld [vmem:[%s5 + $0x20] sm:$0xf]
    %v625 = vld [vmem:[%s5 + $0x24] sm:$0xf]
    %v626 = vld [vmem:[%s5 + $0x28] sm:$0xf]
    %v627 = vld [vmem:[%s5 + $0x2c] sm:$0xf]
    %v628 = vpack.c.bf16 %v615, %v614
    %v637 = vunpack.c.l.b16 %v620
    %v638 = vunpack.c.l.b16 %v621
    %v639 = vunpack.c.l.b16 %v622
    %v640 = vunpack.c.l.b16 %v623
    %v641 = vunpack.c.l.b16 %v624
    %v642 = vunpack.c.l.b16 %v625
    %v643 = vunpack.c.l.b16 %v626
    %v644 = vunpack.c.l.b16 %v627
    %v645 = vpack.c.b16 %v638, %v637
    %v646 = vpack.c.b16 %v640, %v639
    %v647 = vpack.c.b16 %v642, %v641
    %v648 = vpack.c.b16 %v644, %v643
    %653 = vmatpush.bf16.msra.mxu0 0
    %654 = vmatpush.bf16.msra.mxu0 0
    %655 = vmatpush.bf16.msra.mxu0 0
    %656 = vmatpush.bf16.msra.mxu0 0
    %657 = vmatpush.bf16.msra.mxu0 %v648
    %658 = vmatpush.bf16.msra.mxu0 %v647
    %659 = vmatpush.bf16.msra.mxu0 %v646
    %660 = vmatpush.bf16.msra.mxu0 %v645
    %661 = vmatmul.bf16.gmra.mxu0 %v64
    %v662 = vpop.f32.mrf.mxu0
    %v663 = vadd.f32 0.0, %v662
    %v664 = vpop.f32.mrf.mxu0
    %v665 = vadd.f32 0.0, %v664
    %666 = vdwg.mxu0
    %v671 = vunpack.c.l.b16 %v616
    %v672 = vunpack.c.l.b16 %v617
    %v673 = vunpack.c.l.b16 %v618
    %v674 = vunpack.c.l.b16 %v619
    %v675 = vpack.c.b16 %v672, %v671
    %v676 = vpack.c.b16 %v674, %v673
    %v680 = vsel %vm111, %v628, 0
    %682 = vmatpush.bf16.msra.mxu0 0
    %683 = vmatpush.bf16.msra.mxu0 0
    %684 = vmatpush.bf16.msra.mxu0 0
    %685 = vmatpush.bf16.msra.mxu0 0
    %686 = vmatpush.bf16.msra.mxu0 0
    %687 = vmatpush.bf16.msra.mxu0 0
    %688 = vmatpush.bf16.msra.mxu0 %v676
    %689 = vmatpush.bf16.msra.mxu0 %v675
    %690 = vmatmul.bf16.gmra.mxu0 %v680
    %v691 = vpop.f32.mrf.mxu0
    %v692 = vadd.f32 %v663, %v691
    %v693 = vpop.f32.mrf.mxu0
    %v694 = vadd.f32 %v665, %v693
    %695 = vdwg.mxu0
    %v696 = vperm.slane %v27, 3
    %v697 = vadd.f32 %v692, %v696
    %v698 = vadd.f32 %v694, %v696
    %699 = vst [vmem:[#allocation2] sm:$0xff] %v697
    %700 = vst [vmem:[#allocation2 + $0x8] sm:$0xff] %v698
    // Predicated region
    $region26: #{tpu_custom_call.1} parent=1 // pred_check
      _
    $region27: #{tpu_custom_call.1} parent=1 // pred_check_branch
      %702 = sbr.rel (0) target = $region29
    $region28: #{tpu_custom_call.1} parent=1 // pred_region
      %704 = vsyncadd [#allocation3], 0
      %s705 = sshll.u32 [#allocation2], 4
      %s706 = int_to_ptr.vmem [resolvable:$true] %s705
      %s707 = sshll.u32 %s6, 4
      %s708 = int_to_ptr.hbm [resolvable:$true] %s707
      %713 = dma.vmem_to_hbm [thread:$0]  %s706, 256, %s708, [#allocation3], 128, 128, 8
    $region29: #{tpu_custom_call.1} parent=1 // pred_fallthru
      _
    // Predicated region
    $region30: #{tpu_custom_call.1} parent=1 // pred_check
      _
    $region31: #{tpu_custom_call.1} parent=1 // pred_check_branch
      %715 = sbr.rel (0) target = $region33
    $region32: #{tpu_custom_call.1} parent=1 // pred_region
      %717 = dma.done [#allocation3], 256
    $region33: #{tpu_custom_call.1} parent=1 // pred_fallthru
      _
    %718 = vsyncpa [#allocation3], 1

</llo_original>
